<compile_context>
chip_gen: v7x
topology: tpu7x:2x2x1
jax: 0.10.0
libtpu: 0.0.40
codegen_flags: <defaults>
</compile_context>

<pallas_src>
import functools

import jax
import jax.numpy as jnp
from jax.experimental import pallas as pl
from jax.experimental.pallas import tpu as pltpu


def _conv3x3_kernel(x_ref, w_ref, b_ref, o_ref, *, H, W, Cin, Cout, use_refl):
    """One batch tile per grid step.

    x_ref : (NB, H, W*Cin)      NHWC input, W and Cin merged on lanes
    w_ref : (3*W*Cin, W*Cout)   folded conv weights (column taps + width
                                boundary condition baked in)
    b_ref : (1, W*Cout)         bias tiled over w
    o_ref : (NB, H, W*Cout)     NHWC output, W and Cout merged on lanes
    """
    x = x_ref[...]
    NB = x.shape[0]

    # ---- height pad by 1 (reflection or zeros); width padding is folded into
    # the weight matrix, so no halo columns are built here. -------------------
    if use_refl:
        top = x[:, 1:2, :]                      # row h = 1
        bot = x[:, H - 2:H - 1, :]              # row h = H-2
    else:
        top = jnp.zeros((NB, 1, W * Cin), x.dtype)
        bot = jnp.zeros((NB, 1, W * Cin), x.dtype)
    xp = jnp.concatenate([top, x, bot], axis=1)            # (NB, H+2, W*Cin)

    # ---- 3 row taps concatenated on the lane axis --------------------------
    col = jnp.concatenate([xp[:, dh:dh + H, :] for dh in range(3)], axis=-1)
    col = col.reshape(NB * H, 3 * W * Cin)

    # ---- single MXU matmul + one bias add ----------------------------------
    acc = jnp.dot(col, w_ref[...], preferred_element_type=jnp.float32)
    acc = acc + b_ref[...]                                  # (NB*H, W*Cout)

    # Lane-dense store: last dim is W*Cout (128 at the test shape).
    o_ref[...] = acc.reshape(NB, H, W * Cout).astype(o_ref.dtype)


def _fold_weights(weight_oihw, W, use_refl):
    """OIHW (Cout,Cin,3,3) -> (3*W*Cin, W*Cout) block-diagonal-in-w weights.

    The 3 column taps AND the width boundary condition (reflection or zero
    padding) are baked in: row index = (dh, u, ci) with u the *unpadded*
    source column, column index = (w, co) with w the output column.
    """
    Cout, Cin = weight_oihw.shape[0], weight_oihw.shape[1]
    w_hwio = jnp.transpose(weight_oihw, (2, 3, 1, 0))        # (dh, dw, ci, co)

    # Source (unpadded) column for output column w, column tap dw.
    src = jnp.arange(W)[:, None] + jnp.arange(3)[None, :] - 1     # (W, 3)
    if use_refl:
        src = jnp.where(src < 0, -src, src)
        src = jnp.where(src > W - 1, 2 * (W - 1) - src, src)
        valid = jnp.ones(src.shape, dtype=bool)
    else:
        valid = (src >= 0) & (src <= W - 1)
        src = jnp.clip(src, 0, W - 1)

    # onehot[u, w, dw] = 1 iff output column w's tap dw reads input column u.
    onehot = (jnp.arange(W)[:, None, None] == src[None, :, :]) & valid[None]
    onehot = onehot.astype(w_hwio.dtype)

    # big[dh, u, ci, w, co] = sum_dw onehot[u, w, dw] * w_hwio[dh, dw, ci, co]
    big = jnp.einsum("uwd,hdio->huiwo", onehot, w_hwio)      # (3, W, Cin, W, Cout)
    return big.reshape(3 * W * Cin, W * Cout)


def _auto_batch_tile(N, per_image_bytes, vmem_budget=2 * 1024 * 1024):
    """Largest divisor of N under the VMEM budget; keep >=2 grid steps when
    N > 1 so both v7x TensorCores (megacore) get parallel work."""
    best = 1
    for nb in range(1, N + 1):
        if N % nb:
            continue
        if nb * per_image_bytes > vmem_budget:
            break
        if N > 1 and N // nb < 2:
            continue
        best = nb
    return best


def conv3x3_pallas(x_nchw, weight_oihw, bias, *, use_refl=True, batch_tile=None):
    """Equivalent of Conv3x3.forward.

    x_nchw      : (N, Cin, H, W)    float32
    weight_oihw : (Cout, Cin, 3, 3) float32  (PyTorch Conv2d layout)
    bias        : (Cout,)           float32
    returns     : (N, Cout, H, W)   float32
    """
    N, Cin, H, W = x_nchw.shape
    Cout = weight_oihw.shape[0]
    assert H >= 2 and W >= 2, "padding of 1 with reflection needs H, W >= 2"

    # NCHW -> NHWC -> (N, H, W*Cin); the reshape is free on the contiguous NHWC.
    x_m = jnp.transpose(x_nchw, (0, 2, 3, 1)).reshape(N, H, W * Cin)

    w2 = _fold_weights(weight_oihw.astype(jnp.float32), W, use_refl)   # (3*W*Cin, W*Cout)
    b2 = jnp.tile(bias.astype(jnp.float32), W).reshape(1, W * Cout)

    if batch_tile is None:
        per_image = (H * W * Cin + H * W * Cout) * 4 * 2      # double-buffered blocks
        batch_tile = _auto_batch_tile(N, per_image)
    NB = batch_tile
    assert N % NB == 0, (N, NB)

    kernel = functools.partial(_conv3x3_kernel, H=H, W=W, Cin=Cin, Cout=Cout,
                               use_refl=use_refl)

    out = pl.pallas_call(
        kernel,
        out_shape=jax.ShapeDtypeStruct((N, H, W * Cout), x_nchw.dtype),
        grid_spec=pltpu.PrefetchScalarGridSpec(
            num_scalar_prefetch=0,
            grid=(N // NB,),
            in_specs=[
                pl.BlockSpec((NB, H, W * Cin), lambda b: (b, 0, 0)),
                pl.BlockSpec(w2.shape, lambda b: (0, 0)),
                pl.BlockSpec((1, W * Cout), lambda b: (0, 0)),
            ],
            out_specs=pl.BlockSpec((NB, H, W * Cout), lambda b: (b, 0, 0)),
        ),
        compiler_params=pltpu.CompilerParams(
            dimension_semantics=("parallel",)),
    )(x_m, w2, b2)

    # (N, H, W*Cout) -> (N, H, W, Cout) is free; one transpose back to NCHW.
    return jnp.transpose(out.reshape(N, H, W, Cout), (0, 3, 1, 2))


def _reference_conv3x3(x_nchw, weight_oihw, bias, *, use_refl=True):
    """Pure-JAX reference (lax conv) for correctness check."""
    pad_mode = "reflect" if use_refl else "constant"
    x_pad = jnp.pad(x_nchw, ((0, 0), (0, 0), (1, 1), (1, 1)), mode=pad_mode)
    out = jax.lax.conv_general_dilated(
        x_pad, weight_oihw,
        window_strides=(1, 1), padding="VALID",
        dimension_numbers=("NCHW", "OIHW", "NCHW"))
    return out + bias.reshape(1, -1, 1, 1)


if __name__ == "__main__":
    # Small shapes consistent with the module: batch=2, in_ch=4, out_ch=8, 16x16.
    N, Cin, Cout, H, W = 2, 4, 8, 16, 16

    key = jax.random.PRNGKey(0)
    kx, kw, kb = jax.random.split(key, 3)

    x = jax.random.normal(kx, (N, Cin, H, W), dtype=jnp.float32)

    # Deterministic init mimicking PyTorch Conv2d default: U(-1/sqrt(fan_in), +)
    fan_in = Cin * 3 * 3
    bound = 1.0 / (fan_in ** 0.5)
    weight = jax.random.uniform(kw, (Cout, Cin, 3, 3), dtype=jnp.float32,
                                minval=-bound, maxval=bound)
    bias = jax.random.uniform(kb, (Cout,), dtype=jnp.float32,
                              minval=-bound, maxval=bound)

    for use_refl in (True, False):
        out = conv3x3_pallas(x, weight, bias, use_refl=use_refl)
        out = jax.block_until_ready(out)
        ref = _reference_conv3x3(x, weight, bias, use_refl=use_refl)
        assert out.shape == (N, Cout, H, W), out.shape
        err = float(jnp.max(jnp.abs(out - ref)))
        assert jnp.allclose(out, ref, atol=1e-5, rtol=1e-5), err

    print("KERNEL_OK")
</pallas_src>

<mosaic_0001>
module attributes {stable_mosaic.version = 11 : i64} {
  func.func @_conv3x3_kernel(%arg0: i32, %arg1: memref<1x16x64xf32, #tpu.memory_space<vmem>>, %arg2: memref<192x128xf32, #tpu.memory_space<vmem>>, %arg3: memref<1x128xf32, #tpu.memory_space<vmem>>, %arg4: memref<1x16x128xf32, #tpu.memory_space<vmem>>) attributes {dimension_semantics = [#tpu.dimension_semantics<parallel>], iteration_bounds = array<i64: 2>, scalar_prefetch = 0 : i64, scratch_operands = 0 : i64, tpu.core_type = #tpu.core_type<tc>, window_params = [{transform_indices = @transform_0, window_bounds = array<i64: 1, 16, 64>}, {pipeline_mode = #tpu.pipeline_mode<synchronous>, transform_indices = @transform_1, window_bounds = array<i64: 192, 128>}, {pipeline_mode = #tpu.pipeline_mode<synchronous>, transform_indices = @transform_2, window_bounds = array<i64: 1, 128>}, {transform_indices = @transform_3, window_bounds = array<i64: 1, 16, 128>}]} {
    %c0 = arith.constant 0 : index
    %c0_0 = arith.constant 0 : index
    %c0_1 = arith.constant 0 : index
    %0 = vector.load %arg1[%c0, %c0_0, %c0_1] : memref<1x16x64xf32, #tpu.memory_space<vmem>>, vector<1x16x64xf32>
    %1 = vector.extract_strided_slice %0 {offsets = [0, 1, 0], sizes = [1, 1, 64], strides = [1, 1, 1]} : vector<1x16x64xf32> to vector<1x1x64xf32>
    %2 = vector.extract_strided_slice %0 {offsets = [0, 14, 0], sizes = [1, 1, 64], strides = [1, 1, 1]} : vector<1x16x64xf32> to vector<1x1x64xf32>
    %3 = tpu.concatenate %1, %0, %2 in 1 : vector<1x1x64xf32>, vector<1x16x64xf32>, vector<1x1x64xf32> -> vector<1x18x64xf32>
    %4 = vector.extract_strided_slice %3 {offsets = [0, 0, 0], sizes = [1, 16, 64], strides = [1, 1, 1]} : vector<1x18x64xf32> to vector<1x16x64xf32>
    %5 = vector.extract_strided_slice %3 {offsets = [0, 1, 0], sizes = [1, 16, 64], strides = [1, 1, 1]} : vector<1x18x64xf32> to vector<1x16x64xf32>
    %6 = vector.extract_strided_slice %3 {offsets = [0, 2, 0], sizes = [1, 16, 64], strides = [1, 1, 1]} : vector<1x18x64xf32> to vector<1x16x64xf32>
    %7 = tpu.concatenate %4, %5, %6 in 2 : vector<1x16x64xf32>, vector<1x16x64xf32>, vector<1x16x64xf32> -> vector<1x16x192xf32>
    %8 = vector.shape_cast %7 : vector<1x16x192xf32> to vector<16x192xf32>
    %c0_2 = arith.constant 0 : index
    %c0_3 = arith.constant 0 : index
    %9 = vector.load %arg2[%c0_2, %c0_3] : memref<192x128xf32, #tpu.memory_space<vmem>>, vector<192x128xf32>
    %cst = arith.constant dense<0.000000e+00> : vector<16x128xf32>
    %10 = tpu.matmul %8, %9, %cst {dimension_numbers = #tpu.dot_dimension_numbers<[1], [0], [0], [1], [0, 0, 1, 1], [], []>} : vector<16x192xf32>, vector<192x128xf32>, vector<16x128xf32> -> vector<16x128xf32>
    %c0_4 = arith.constant 0 : index
    %c0_5 = arith.constant 0 : index
    %11 = vector.load %arg3[%c0_4, %c0_5] : memref<1x128xf32, #tpu.memory_space<vmem>>, vector<1x128xf32>
    %12 = vector.broadcast %11 : vector<1x128xf32> to vector<16x128xf32>
    %13 = arith.addf %10, %12 : vector<16x128xf32>
    %14 = vector.shape_cast %13 : vector<16x128xf32> to vector<1x16x128xf32>
    %c0_6 = arith.constant 0 : index
    %c0_7 = arith.constant 0 : index
    %c0_8 = arith.constant 0 : index
    %15 = vector.load %arg4[%c0_6, %c0_7, %c0_8] : memref<1x16x128xf32, #tpu.memory_space<vmem>>, vector<1x16x128xf32>
    tpu.vector_store %arg4[%c0_6, %c0_7, %c0_8], %14 {strides = array<i32>} : memref<1x16x128xf32, #tpu.memory_space<vmem>>, vector<1x16x128xf32>,
    return
  }
  func.func @transform_0(%arg0: i32) -> (i32, i32, i32) {
    %c0_i32 = arith.constant 0 : i32
    %c0_i32_0 = arith.constant 0 : i32
    %c0_i32_1 = arith.constant 0 : i32
    return %arg0, %c0_i32, %c0_i32_0 : i32, i32, i32
  }
  func.func @transform_1(%arg0: i32) -> (i32, i32) {
    %c0_i32 = arith.constant 0 : i32
    %c0_i32_0 = arith.constant 0 : i32
    %c0_i32_1 = arith.constant 0 : i32
    return %c0_i32, %c0_i32_0 : i32, i32
  }
  func.func @transform_2(%arg0: i32) -> (i32, i32) {
    %c0_i32 = arith.constant 0 : i32
    %c0_i32_0 = arith.constant 0 : i32
    %c0_i32_1 = arith.constant 0 : i32
    return %c0_i32, %c0_i32_0 : i32, i32
  }
  func.func @transform_3(%arg0: i32) -> (i32, i32, i32) {
    %c0_i32 = arith.constant 0 : i32
    %c0_i32_0 = arith.constant 0 : i32
    %c0_i32_1 = arith.constant 0 : i32
    return %arg0, %c0_i32, %c0_i32_0 : i32, i32, i32
  }
}

</mosaic_0001>

<llo_original>
// kernel: tpu_custom_call.1
$region0: #{tpu_custom_call.1}
  #allocation0 [shape = 'u32[]', space=smem, size = 0x4, offset = 0x4, fixed_abs, tag = 'smem constant byte address 0x4 - core index']
  #allocation1 [shape = 'u32[144,128]{1,0:T(1,128)}', space=vmem, size = 0x12000, scoped, tag = 'internal scratch']
  %s0 = inlined_call_operand.hbm [shape: f32[2,16,64], index: 0, kind: input, shape index: {}]
  %s1 = inlined_call_operand.hbm [shape: f32[192,128], index: 1, kind: input, shape index: {}]
  %s2 = inlined_call_operand.vmem [shape: f32[1,128], index: 2, kind: input, shape index: {}]
  %s3 = inlined_call_operand.hbm [shape: f32[2,16,128], index: 3, kind: output, shape index: {}]
  %s4 = sld [smem:[#allocation0]]
  $region53: #{tpu_custom_call.1} parent=0
    _
  %s6 = ssub.s32 1, %s4
  %s7 = scalar_select 0, %s6, %s4
  $region1: #{tpu_custom_call.1} parent=0
    #allocation2 [shape = 'u8[16384]{0}', space=vmem, size = 0x4000, scoped, tag = 'input window, operand 0']
    #allocation3 [shape = 's32[2]{0}', space=sflag, size = 0x8, scoped, tag = 'scoped memory for tpu_custom_call.1']
    #allocation4 [shape = 's32[2]{0}', space=sflag, size = 0x8, scoped, tag = 'scoped memory for tpu_custom_call.1']
    #allocation5 [shape = 'u8[98304]{0}', space=vmem, size = 0x18000, scoped, tag = 'input window, operand 1, single buffered']
    #allocation6 [shape = 's32[1]{0}', space=sflag, size = 0x4, scoped, tag = 'scoped memory for tpu_custom_call.1']
    #allocation7 [shape = 'u8[16384]{0}', space=vmem, size = 0x4000, scoped, tag = 'output window, operand 0']
    %8 = vsyncpa [#allocation3], 0
    %s9 = scalar_lea.sflag [#allocation3], 1
    %10 = vsyncpa %s9, 0
    %11 = vsyncpa [#allocation6], 0
    %12 = vsyncpa [#allocation4], 0
    %s13 = scalar_lea.sflag [#allocation4], 1
    %14 = vsyncpa %s13, 0
    loop: start=0, step=1, limit=4
    $region2: #{tpu_custom_call.1} parent=1 // loop_pre_header
      _
    $region3: #{tpu_custom_call.1} parent=1 // loop_header
      %s16 = sphi 0, %s20
      %p17 = scmp.ge.s32.totalorder %s16, 4
      %s26 = sphi 0, %s28
      %s29 = sphi 0, %s26
      %s30 = sphi 0, %s29
      %s46 = sphi 0, %s30
      %s50 = sphi 0, %s50
      %s52 = sphi 0, %s50
      %s53 = sphi 0, %s52
      %s67 = sphi 0, %s53
      %s71 = sphi 0, %s71
      %s73 = sphi 0, %s71
      %s74 = sphi 0, %s73
      %s88 = sphi 0, %s74
      %s94 = sphi 0, %s96
      %s97 = sphi 0, %s94
      %s98 = sphi 0, %s97
      %s114 = sphi 0, %s98
    $region4: #{tpu_custom_call.1} parent=1 // loop_header_branch
      %19 = sbr.rel (%p17) target = $region8
    $region5: #{tpu_custom_call.1} parent=1 // loop_body
      %s21 = ssub.s32 %s16, 1
      %s22 = ssub.s32 %s16, 2
      %s23 = sadd.s32 %s16, 1
      %s24 = ssub.s32 %s16, %s23
      %p25 = scmp.eq.s32.totalorder %s24, 0
      %s27 = sadd.s32 %s26, 1
      %s28 = scalar_select %p25, %s26, %s27
      %p31 = pneg %p25
      %p32 = scmp.eq.s32.totalorder %s16, 1
      %p33 = por %p31, %p32
      %p34 = scmp.ne.s32.totalorder %s26, %s29
      %p35 = scmp.eq.s32.totalorder %s16, 0
      %p36 = por %p34, %p35
      %p37 = scmp.ne.s32.totalorder %s26, %s29
      %p38 = scmp.eq.s32.totalorder %s21, 1
      %p39 = por %p37, %p38
      %p40 = scmp.ne.s32.totalorder %s29, %s30
      %p41 = scmp.eq.s32.totalorder %s21, 0
      %p42 = por %p40, %p41
      %p43 = scmp.ne.s32.totalorder %s29, %s30
      %p44 = scmp.eq.s32.totalorder %s22, 1
      %p45 = por %p43, %p44
      %p47 = scmp.ne.s32.totalorder %s30, %s46
      %p48 = scmp.eq.s32.totalorder %s22, 0
      %p49 = por %p47, %p48
      %s51 = sadd.s32 %s50, 1
      %p54 = scmp.eq.s32.totalorder %s16, 1
      %p55 = scmp.ne.s32.totalorder %s50, %s52
      %p56 = scmp.eq.s32.totalorder %s16, 0
      %p57 = por %p55, %p56
      %p58 = scmp.ne.s32.totalorder %s50, %s52
      %p59 = scmp.eq.s32.totalorder %s21, 1
      %p60 = por %p58, %p59
      %p61 = scmp.ne.s32.totalorder %s52, %s53
      %p62 = scmp.eq.s32.totalorder %s21, 0
      %p63 = por %p61, %p62
      %p64 = scmp.ne.s32.totalorder %s52, %s53
      %p65 = scmp.eq.s32.totalorder %s22, 1
      %p66 = por %p64, %p65
      %p68 = scmp.ne.s32.totalorder %s53, %s67
      %p69 = scmp.eq.s32.totalorder %s22, 0
      %p70 = por %p68, %p69
      %s72 = sadd.s32 %s71, 1
      %p75 = scmp.eq.s32.totalorder %s16, 1
      %p76 = scmp.ne.s32.totalorder %s71, %s73
      %p77 = scmp.eq.s32.totalorder %s16, 0
      %p78 = por %p76, %p77
      %p79 = scmp.ne.s32.totalorder %s71, %s73
      %p80 = scmp.eq.s32.totalorder %s21, 1
      %p81 = por %p79, %p80
      %p82 = scmp.ne.s32.totalorder %s73, %s74
      %p83 = scmp.eq.s32.totalorder %s21, 0
      %p84 = por %p82, %p83
      %p85 = scmp.ne.s32.totalorder %s73, %s74
      %p86 = scmp.eq.s32.totalorder %s22, 1
      %p87 = por %p85, %p86
      %p89 = scmp.ne.s32.totalorder %s74, %s88
      %p90 = scmp.eq.s32.totalorder %s22, 0
      %p91 = por %p89, %p90
      %s92 = ssub.s32 %s16, %s23
      %p93 = scmp.eq.s32.totalorder %s92, 0
      %s95 = sadd.s32 %s94, 1
      %s96 = scalar_select %p93, %s94, %s95
      %p99 = pneg %p93
      %p100 = scmp.eq.s32.totalorder %s16, 1
      %p101 = por %p99, %p100
      %p102 = scmp.ne.s32.totalorder %s94, %s97
      %p103 = scmp.eq.s32.totalorder %s16, 0
      %p104 = por %p102, %p103
      %p105 = scmp.ne.s32.totalorder %s94, %s97
      %p106 = scmp.eq.s32.totalorder %s21, 1
      %p107 = por %p105, %p106
      %p108 = scmp.ne.s32.totalorder %s97, %s98
      %p109 = scmp.eq.s32.totalorder %s21, 0
      %p110 = por %p108, %p109
      %p111 = scmp.ne.s32.totalorder %s97, %s98
      %p112 = scmp.eq.s32.totalorder %s22, 1
      %p113 = por %p111, %p112
      %p115 = scmp.ne.s32.totalorder %s98, %s114
      %p116 = scmp.eq.s32.totalorder %s22, 0
      %p117 = por %p115, %p116
      %p118 = scmp.le.s32.totalorder 1, %s16
      %p119 = scmp.lt.s32.totalorder %s16, 3
      %p120 = pnand %p118, %p119
      %p121 = pneg %p120
      // Predicated region
      $region9: #{tpu_custom_call.1} parent=5 // pred_check
        _
      $region10: #{tpu_custom_call.1} parent=5 // pred_check_branch
        %123 = sbr.rel (%p120) target = $region12
      $region11: #{tpu_custom_call.1} parent=5 // pred_region
        %s124 = ssub.s32 %s16, 1
        // Predicated region
        $region13: #{tpu_custom_call.1} parent=11 // pred_check
          %p125 = pneg %p63
        $region14: #{tpu_custom_call.1} parent=11 // pred_check_branch
          %127 = sbr.rel (%p125) target = $region16
        $region15: #{tpu_custom_call.1} parent=11 // pred_region
          %s129 = ssub.s32 3072, 3072
          %130 = vsyncadd [#allocation6], %s129
          %s131 = sshll.u32 [#allocation5], 4
          %s132 = int_to_ptr.vmem [resolvable:$true] %s131
          %137 = dma.hbm_to_vmem [thread:$0]  %s1, 3072, %s132, [#allocation6], 128, 128, 8
        $region16: #{tpu_custom_call.1} parent=11 // pred_fallthru
          _
        // Predicated region
        $region17: #{tpu_custom_call.1} parent=11 // pred_check
          %p138 = pneg %p84
        $region18: #{tpu_custom_call.1} parent=11 // pred_check_branch
          %140 = sbr.rel (%p138) target = $region20
        $region19: #{tpu_custom_call.1} parent=11 // pred_region
          _
        $region20: #{tpu_custom_call.1} parent=11 // pred_fallthru
          _
      $region12: #{tpu_custom_call.1} parent=5 // pred_fallthru
        _
      %p141 = scmp.lt.s32.totalorder %s16, 2
      // Predicated region
      $region21: #{tpu_custom_call.1} parent=5 // pred_check
        %p142 = pneg %p141
      $region22: #{tpu_custom_call.1} parent=5 // pred_check_branch
        %144 = sbr.rel (%p142) target = $region24
      $region23: #{tpu_custom_call.1} parent=5 // pred_region
        // Predicated region
        $region25: #{tpu_custom_call.1} parent=23 // pred_check
          %p145 = pneg %p36
        $region26: #{tpu_custom_call.1} parent=23 // pred_check_branch
          %147 = sbr.rel (%p145) target = $region28
        $region27: #{tpu_custom_call.1} parent=23 // pred_region
          %s148 = sand.u32 %s26, 1
          %s149 = scalar_lea.sflag [#allocation3], %s148
          %s150 = sand.u32 %s26, 1
          %s151 = smul.addr %s150, 16
          %s152 = scalar_lea.vmem [#allocation2], %s151
          %s154 = ssub.s32 256, 256
          %155 = vsyncadd %s149, %s154
          %s156 = smul.addr %s16, 2
          %s157 = smul.addr %s156, 128
          %s158 = scalar_lea.hbm %s0, %s157
          %s159 = sshll.u32 %s152, 4
          %s160 = int_to_ptr.vmem [resolvable:$true] %s159
          %165 = dma.hbm_to_vmem [thread:$0]  %s158, 256, %s160, %s149, 128, 128, 8
        $region28: #{tpu_custom_call.1} parent=23 // pred_fallthru
          _
      $region24: #{tpu_custom_call.1} parent=5 // pred_fallthru
        _
      %p166 = scmp.le.s32.totalorder 1, %s16
      %p167 = scmp.lt.s32.totalorder %s16, 3
      %p168 = pnand %p166, %p167
      %p169 = pneg %p168
      // Predicated region
      $region29: #{tpu_custom_call.1} parent=5 // pred_check
        _
      $region30: #{tpu_custom_call.1} parent=5 // pred_check_branch
        %171 = sbr.rel (%p168) target = $region32
      $region31: #{tpu_custom_call.1} parent=5 // pred_region
        %s172 = ssub.s32 %s16, 1
        %s173 = sand.u32 %s29, 1
        %s174 = scalar_lea.sflag [#allocation3], %s173
        %s175 = sand.u32 %s29, 1
        %s176 = smul.addr %s175, 16
        %s177 = scalar_lea.vmem [#allocation2], %s176
        // Predicated region
        $region33: #{tpu_custom_call.1} parent=31 // pred_check
          %p178 = pneg %p42
        $region34: #{tpu_custom_call.1} parent=31 // pred_check_branch
          %180 = sbr.rel (%p178) target = $region36
        $region35: #{tpu_custom_call.1} parent=31 // pred_region
          %181 = dma.done %s174, 256
        $region36: #{tpu_custom_call.1} parent=31 // pred_fallthru
          _
        // Predicated region
        $region37: #{tpu_custom_call.1} parent=31 // pred_check
          %p182 = pneg %p63
        $region38: #{tpu_custom_call.1} parent=31 // pred_check_branch
          %184 = sbr.rel (%p182) target = $region40
        $region39: #{tpu_custom_call.1} parent=31 // pred_region
          %185 = dma.done [#allocation6], 3072
        $region40: #{tpu_custom_call.1} parent=31 // pred_fallthru
          _
        %s186 = sand.u32 %s29, 1
        %s187 = scalar_lea.sflag [#allocation3], %s186
        %s188 = sand.u32 %s29, 1
        %s189 = smul.addr %s188, 16
        %s190 = scalar_lea.vmem [#allocation2], %s189
        %p191 = pneg %p42
        %p192 = pneg %p39
        %p193 = pneg %p63
        %p194 = pneg %p60
        %p195 = pneg %p84
        %p196 = pneg %p81
        %p197 = pneg %p110
        %p198 = pneg %p107
        %s199 = sand.u32 %s97, 1
        %s200 = scalar_lea.sflag [#allocation4], %s199
        %s201 = sand.u32 %s97, 1
        %s202 = smul.addr %s201, 16
        %s203 = scalar_lea.vmem [#allocation7], %s202
        %v204 = vld [vmem:[%s177] sm:$0xff]
        %v205 = vld [vmem:[%s177 + $0x8] sm:$0xff]
        %v207 = vrot.slane %v204, 1
        %vm210 = vcmask 1040384
        %v211 = vrot.slane %v204, 7
        %v212 = vrot.slane %v205, 7
        %v213 = vsel %vm210, %v211, %v212
        %v217 = vrot.slane %v205, 5
        %v219 = vsel %vm210, %v207, %v211
        %v220 = vsel %vm210, %v212, %v217
        %vm223 = vcmask 1046528
        %v224 = vrot.slane %v219, 1
        %v225 = vrot.slane %v213, 1
        %v226 = vsel %vm223, %v224, %v225
        %v227 = vrot.slane %v220, 1
        %v228 = vsel %vm223, %v225, %v227
        %229 = vrot.lane.b32.xlu0 %v226, 64
        %v230 = vpop.permute.xlu0 %229
        %231 = vrot.lane.b32.xlu0 %v228, 64
        %v232 = vpop.permute.xlu0 %231
        %vm235 = vcmask 1045504
        %v236 = vrot.slane %v219, 2
        %v237 = vrot.slane %v213, 2
        %v238 = vsel %vm235, %v236, %v237
        %v239 = vrot.slane %v220, 2
        %v240 = vsel %vm235, %v237, %v239
        %vm241 = vcmask 523264
        %v242 = vsel %vm241, %v219, %v230
        %v243 = vsel %vm241, %v213, %v232
        %v244 = vld [vmem:[#allocation5] sm:$0xff]
        %v245 = vld [vmem:[#allocation5 + $0x8] sm:$0xff]
        %v246 = vld [vmem:[#allocation5 + $0x10] sm:$0xff]
        %v247 = vld [vmem:[#allocation5 + $0x18] sm:$0xff]
        %v248 = vld [vmem:[#allocation5 + $0x20] sm:$0xff]
        %v249 = vld [vmem:[#allocation5 + $0x28] sm:$0xff]
        %v250 = vld [vmem:[#allocation5 + $0x30] sm:$0xff]
        %v251 = vld [vmem:[#allocation5 + $0x38] sm:$0xff]
        %v252 = vld [vmem:[#allocation5 + $0x40] sm:$0xff]
        %v253 = vld [vmem:[#allocation5 + $0x48] sm:$0xff]
        %v254 = vld [vmem:[#allocation5 + $0x50] sm:$0xff]
        %v255 = vld [vmem:[#allocation5 + $0x58] sm:$0xff]
        %v256 = vld [vmem:[#allocation5 + $0x60] sm:$0xff]
        %v257 = vld [vmem:[#allocation5 + $0x68] sm:$0xff]
        %v258 = vld [vmem:[#allocation5 + $0x70] sm:$0xff]
        %v259 = vld [vmem:[#allocation5 + $0x78] sm:$0xff]
        %v260 = vld [vmem:[#allocation5 + $0x80] sm:$0xff]
        %v261 = vld [vmem:[#allocation5 + $0x88] sm:$0xff]
        %v262 = vld [vmem:[#allocation5 + $0x90] sm:$0xff]
        %v263 = vld [vmem:[#allocation5 + $0x98] sm:$0xff]
        %v264 = vld [vmem:[#allocation5 + $0xa0] sm:$0xff]
        %v265 = vld [vmem:[#allocation5 + $0xa8] sm:$0xff]
        %v266 = vld [vmem:[#allocation5 + $0xb0] sm:$0xff]
        %v267 = vld [vmem:[#allocation5 + $0xb8] sm:$0xff]
        %v268 = vld [vmem:[%s2] sm:$0x1]
        %v270 = vlaneseq
        %v271 = vshrl.u32 %v270, 7
        %v272 = vsub.s32 0, %v271
        %v273 = vrot.slane %v268, %v272
        %v275 = vsel %vm241, %v238, 0
        %v277 = vsel %vm241, %v240, 0
        %279 = vmatprep.subr.mxu0 0.0
        %280 = vmatpush1.msra.mxu0 %v244
        %281 = vmatprep.subr.mxu0 0.0
        %282 = vmatpush1.msra.mxu0 %v245
        %283 = vmatprep.subr.mxu0 0.0
        %284 = vmatpush1.msra.mxu0 %v246
        %285 = vmatprep.subr.mxu0 0.0
        %286 = vmatpush1.msra.mxu0 %v247
        %287 = vmatprep.subr.mxu0 0.0
        %288 = vmatpush1.msra.mxu0 %v248
        %289 = vmatprep.subr.mxu0 0.0
        %290 = vmatpush1.msra.mxu0 %v249
        %291 = vmatprep.subr.mxu0 0.0
        %292 = vmatpush1.msra.mxu0 %v250
        %293 = vmatprep.subr.mxu0 0.0
        %294 = vmatpush1.msra.mxu0 %v251
        %295 = vmatprep.subr.mxu0 0.0
        %296 = vmatpush1.msra.mxu0 %v252
        %297 = vmatprep.subr.mxu0 0.0
        %298 = vmatpush1.msra.mxu0 %v253
        %299 = vmatprep.subr.mxu0 0.0
        %300 = vmatpush1.msra.mxu0 %v254
        %301 = vmatprep.subr.mxu0 0.0
        %302 = vmatpush1.msra.mxu0 %v255
        %303 = vmatprep.subr.mxu0 0.0
        %304 = vmatpush1.msra.mxu0 %v256
        %305 = vmatprep.subr.mxu0 0.0
        %306 = vmatpush1.msra.mxu0 %v257
        %307 = vmatprep.subr.mxu0 0.0
        %308 = vmatpush1.msra.mxu0 %v258
        %309 = vmatprep.subr.mxu0 0.0
        %310 = vmatpush1.msra.mxu0 %v259
        %311 = vmatprep.subr.mxu0 0.0
        %312 = vmatpush1.msra.mxu0 %v260
        %313 = vmatprep.subr.mxu0 0.0
        %314 = vmatpush1.msra.mxu0 %v261
        %315 = vmatprep.subr.mxu0 0.0
        %316 = vmatpush1.msra.mxu0 %v262
        %317 = vmatprep.subr.mxu0 0.0
        %318 = vmatpush1.msra.mxu0 %v263
        %319 = vmatprep.subr.mxu0 0.0
        %320 = vmatpush1.msra.mxu0 %v264
        %321 = vmatprep.subr.mxu0 0.0
        %322 = vmatpush1.msra.mxu0 %v265
        %323 = vmatprep.subr.mxu0 0.0
        %324 = vmatpush1.msra.mxu0 %v266
        %325 = vmatprep.subr.mxu0 0.0
        %326 = vmatpush1.msra.mxu0 %v267
        %327 = vmatprep.subr.mxu0 0.0
        %328 = vmatpush1.msra.mxu0 0.0
        %329 = vmatprep.subr.mxu0 0.0
        %330 = vmatpush1.msra.mxu0 0.0
        %331 = vmatprep.subr.mxu0 0.0
        %332 = vmatpush1.msra.mxu0 0.0
        %333 = vmatprep.subr.mxu0 0.0
        %334 = vmatpush1.msra.mxu0 0.0
        %335 = vmatprep.subr.mxu0 0.0
        %336 = vmatpush1.msra.mxu0 0.0
        %337 = vmatprep.subr.mxu0 0.0
        %338 = vmatpush1.msra.mxu0 0.0
        %339 = vmatprep.subr.mxu0 0.0
        %340 = vmatpush1.msra.mxu0 0.0
        %341 = vmatprep.subr.mxu0 0.0
        %342 = vmatpush1.msra.mxu0 0.0
        %343 = vmatprep.mubr.f32.mxu0 %v275
        %344 = vmatmul.mubr.f32.gmra.mrb[0].mxu0 %v242
        %v345 = vpop.f32.mrb[0].mxu0
        %v346 = vadd.f32 %v273, %v345
        %v347 = vpop.f32.mrb[0].mxu0
        %348 = vmatprep.mubr.f32.mxu0 %v277
        %349 = vmatmul.mubr.f32.gmra.mrb[0].mxu0 %v243
        %v350 = vpop.f32.mrb[0].mxu0
        %v351 = vadd.f32 %v273, %v350
        %v352 = vpop.f32.mrb[0].mxu0
        %353 = vdwg.mxu0
        %354 = vst [vmem:[%s203] sm:$0xff] %v346
        %355 = vst [vmem:[%s203 + $0x8] sm:$0xff] %v351
        %s356 = sand.u32 %s97, 1
        %s357 = scalar_lea.sflag [#allocation4], %s356
        %s358 = sand.u32 %s97, 1
        %s359 = smul.addr %s358, 16
        %s360 = scalar_lea.vmem [#allocation7], %s359
        // Predicated region
        $region41: #{tpu_custom_call.1} parent=31 // pred_check
          %p361 = pneg %p107
        $region42: #{tpu_custom_call.1} parent=31 // pred_check_branch
          %363 = sbr.rel (%p361) target = $region44
        $region43: #{tpu_custom_call.1} parent=31 // pred_region
          %s365 = ssub.s32 256, 256
          %366 = vsyncadd %s357, %s365
          %s367 = smul.addr %s21, 2
          %s368 = smul.addr %s367, 128
          %s369 = scalar_lea.hbm %s3, %s368
          %s370 = sshll.u32 %s360, 4
          %s371 = int_to_ptr.vmem [resolvable:$true] %s370
          %376 = dma.vmem_to_hbm [thread:$0]  %s371, 256, %s369, %s357, 128, 128, 8
        $region44: #{tpu_custom_call.1} parent=31 // pred_fallthru
          _
      $region32: #{tpu_custom_call.1} parent=5 // pred_fallthru
        _
      %p377 = scmp.le.s32.totalorder 2, %s16
      // Predicated region
      $region45: #{tpu_custom_call.1} parent=5 // pred_check
        %p378 = pneg %p377
      $region46: #{tpu_custom_call.1} parent=5 // pred_check_branch
        %380 = sbr.rel (%p378) target = $region48
      $region47: #{tpu_custom_call.1} parent=5 // pred_region
        %s381 = ssub.s32 %s16, 2
        // Predicated region
        $region49: #{tpu_custom_call.1} parent=47 // pred_check
          %p382 = pneg %p113
        $region50: #{tpu_custom_call.1} parent=47 // pred_check_branch
          %384 = sbr.rel (%p382) target = $region52
        $region51: #{tpu_custom_call.1} parent=47 // pred_region
          %s385 = sand.u32 %s98, 1
          %s386 = scalar_lea.sflag [#allocation4], %s385
          %s387 = sand.u32 %s98, 1
          %s388 = smul.addr %s387, 16
          %s389 = scalar_lea.vmem [#allocation7], %s388
          %390 = dma.done %s386, 256
        $region52: #{tpu_custom_call.1} parent=47 // pred_fallthru
          _
      $region48: #{tpu_custom_call.1} parent=5 // pred_fallthru
        _
    $region6: #{tpu_custom_call.1} parent=1 // loop_footer
      %s20 = sadd.s32 1, %s16
    $region7: #{tpu_custom_call.1} parent=1 // loop_footer_branch
      %15 = sbr.rel target = $region3
    $region8: #{tpu_custom_call.1} parent=1 // loop_exit
      _
    %391 = vsyncpa [#allocation3], 1
    %s392 = scalar_lea.sflag [#allocation3], 1
    %393 = vsyncpa %s392, 1
    %394 = vsyncpa [#allocation6], 1
    %395 = vsyncpa [#allocation4], 1
    %s396 = scalar_lea.sflag [#allocation4], 1
    %397 = vsyncpa %s396, 1

</llo_original>
